<compile_context>
chip_gen: v5e
topology: v5e:2x2
jax: 0.10.0
libtpu: 0.0.40
codegen_flags: <defaults>
</compile_context>

<pallas_src>
import functools
import math

import jax
import jax.numpy as jnp
from jax.experimental import pallas as pl
from jax.experimental.pallas import tpu as pltpu

SCALE = math.sqrt(0.5)
LANE = 128


def _round_up(n, m):
    return ((n + m - 1) // m) * m


def bio_encoder_kernel(emb_ref, w_e2h_ref, b_e2h_ref, conv_w_ref, conv_b_ref,
                       w_out_ref, b_out_ref, out_ref, *, bb):
    # Rows are time-major with the LAST timestep first: row r = w*bb + i, where w=0 is
    # the final timestep and i indexes the bb sequences of this grid step.
    x = emb_ref[0]                                   # [N, Dp] bf16, N = W*bb
    n = x.shape[0]
    hp = b_e2h_ref.shape[-1]                         # padded hidden width (lanes)
    n_layers = conv_w_ref.shape[0]

    # emb2hid (bf16 operands, f32 accumulation)
    h = (jnp.dot(x, w_e2h_ref[...], preferred_element_type=jnp.float32)
         + b_e2h_ref[...])                           # [N, Hp] f32

    if n > bb:
        # Built in-kernel (no HBM aux input).  The roll of an int32 iota identifies, per
        # row, which of the two cyclic rolls below is the "row r-bb" one, keeping the
        # code independent of the pltpu.roll rotation-direction convention.  Hoisted.
        ridx = jax.lax.broadcasted_iota(jnp.int32, (n, hp), 0)
        ria = pltpu.roll(ridx, bb, axis=0)
        sel_dn = ria == ridx - bb                    # this roll yields h[r-bb]
        sel_up = ria == ridx + bb                    # this roll yields h[r+bb]
        next_m = (ridx >= bb).astype(jnp.float32)    # w=0 (last timestep) has no "next"
        prev_m = (ridx < n - bb).astype(jnp.float32) # w=W-1 (oldest in window): zero pad

    for l in range(n_layers):                        # static unroll (small L)
        hb = h.astype(jnp.bfloat16)
        if n > bb:
            ra = pltpu.roll(h, bb, axis=0)
            rb = pltpu.roll(h, n - bb, axis=0)
            # x_prev = h at t-1 = row r+bb ; x_next = h at t+1 = row r-bb
            x_prev = (jnp.where(sel_up, ra, rb) * prev_m).astype(jnp.bfloat16)
            x_next = (jnp.where(sel_dn, ra, rb) * next_m).astype(jnp.bfloat16)
        else:                                        # single-timestep window
            x_prev = jnp.zeros_like(hb)
            x_next = jnp.zeros_like(hb)

        # Conv1d(k=3, pad=1) + both GLU halves as ONE matmul: [N,3Hp] @ [3Hp,2Hp]
        xcat = jnp.concatenate([x_prev, hb, x_next], axis=1)      # bf16
        ag = (jnp.dot(xcat, conv_w_ref[l], preferred_element_type=jnp.float32)
              + conv_b_ref[l])                       # [N, 2Hp] f32
        a, g = ag[:, :hp], ag[:, hp:]
        h = (a * jax.nn.sigmoid(g) + h) * SCALE      # GLU + residual + scale, f32

    # Scoring head (hid2emb folded with bio_scoring, f32) only on the last timestep of
    # each sequence: with the time-reversed layout those are the FIRST bb rows.
    h_last = h[:bb, :]                               # [bb, Hp] f32
    out_ref[0] = (jnp.dot(h_last, w_out_ref[...],
                          preferred_element_type=jnp.float32) + b_out_ref[...])


def pack_bio_encoder_params(p):
    """Pad channels to 128 lanes, pack conv taps/GLU halves, fold the output head."""
    D = p["E_tok"].shape[1]
    H = p["W_e2h"].shape[1]
    O = p["W_sc"].shape[1]
    L = p["conv_wa"].shape[0]
    Dp, Hp, Op = _round_up(D, LANE), _round_up(H, LANE), _round_up(O, LANE)

    def pad2(m, r, c):
        return jnp.pad(m, ((0, r - m.shape[0]), (0, c - m.shape[1])))

    w_e2h = pad2(p["W_e2h"], Dp, Hp).astype(jnp.bfloat16)
    b_e2h = pad2(p["b_e2h"], 1, Hp)                                   # f32

    conv_w, conv_b = [], []
    for l in range(L):
        taps = []
        for k in range(3):                                            # (prev, cur, next)
            wa = pad2(p["conv_wa"][l, k], Hp, Hp)
            wg = pad2(p["conv_wg"][l, k], Hp, Hp)
            taps.append(jnp.concatenate([wa, wg], axis=1))            # [Hp, 2Hp]
        conv_w.append(jnp.concatenate(taps, axis=0))                  # [3Hp, 2Hp]
        ba = pad2(p["conv_ba"][l], 1, Hp)
        bg = pad2(p["conv_bg"][l], 1, Hp)
        conv_b.append(jnp.concatenate([ba, bg], axis=1))              # [1, 2Hp]
    conv_w = jnp.stack(conv_w).astype(jnp.bfloat16)                   # [L, 3Hp, 2Hp]
    conv_b = jnp.stack(conv_b)                                        # [L, 1, 2Hp] f32

    # Fold hid2emb followed by bio_scoring into one affine map (mathematically exact).
    # Kept in f32: the head is tiny and this avoids an extra bf16 rounding of the product.
    w_h2e = pad2(p["W_h2e"], Hp, Dp)
    b_h2e = pad2(p["b_h2e"], 1, Dp)
    w_sc = pad2(p["W_sc"], Dp, Op)
    b_sc = pad2(p["b_sc"], 1, Op)
    w_out = w_h2e @ w_sc                                              # [Hp, Op] f32
    b_out = b_h2e @ w_sc + b_sc                                       # [1, Op]  f32

    return dict(E_tok=p["E_tok"], E_pos=p["E_pos"],
                W_e2h=w_e2h, b_e2h=b_e2h, conv_w=conv_w, conv_b=conv_b,
                W_out=w_out, b_out=b_out, n_layers=L,
                dims=(D, H, O, Dp, Hp, Op))


def bio_encoder_conv_forward(bio, bio_lengths, packed, *, bb=None):
    """bio: int32 [B, T] token ids; bio_lengths unused (matches the torch module)."""
    del bio_lengths
    B, T = bio.shape
    D, H, O, Dp, Hp, Op = packed["dims"]
    L = packed["n_layers"]

    # Receptive field of the last token with k=3/pad=1 convs is exactly L+1 positions:
    # only the last W timesteps can influence the score (exact, not an approximation).
    W = min(T, L + 1)

    # nb >= 2 by default so ("parallel",) can shard the grid over both v7x TensorCores;
    # on v5e/v6e the extra grid step costs ~0.35 us and re-DMAs a few hundred KiB of
    # weights — negligible.  Callers may pass bb explicitly for other splits.
    if bb is None:
        bb = max(1, -(-B // 2))
    nb = -(-B // bb)
    bpad = nb * bb
    n = W * bb                                       # rows per grid step (time-major)

    # Glue (plain JAX): embedding gathers + positional embedding on the W-window only,
    # time axis reversed (last timestep first), lane/batch padding, time-major rows.
    emb = (jnp.take(packed["E_tok"], bio[:, T - W:], axis=0)
           + packed["E_pos"][T - W:T][None])                          # [B, W, D] f32
    emb = emb[:, ::-1, :]                                             # w=0 <-> t=T-1
    emb = jnp.pad(emb, ((0, bpad - B), (0, 0), (0, Dp - D)))
    emb = (emb.reshape(nb, bb, W, Dp).transpose(0, 2, 1, 3)
              .reshape(nb, n, Dp).astype(jnp.bfloat16))               # [nb, W*bb, Dp]

    def full_spec(a):
        nd = a.ndim
        return pl.BlockSpec(a.shape, lambda b, _nd=nd: (0,) * _nd)

    out = pl.pallas_call(
        functools.partial(bio_encoder_kernel, bb=bb),
        out_shape=jax.ShapeDtypeStruct((nb, bb, Op), jnp.float32),
        grid=(nb,),
        in_specs=[
            pl.BlockSpec((1, n, Dp), lambda b: (b, 0, 0)),
            full_spec(packed["W_e2h"]), full_spec(packed["b_e2h"]),
            full_spec(packed["conv_w"]), full_spec(packed["conv_b"]),
            full_spec(packed["W_out"]), full_spec(packed["b_out"]),
        ],
        out_specs=pl.BlockSpec((1, bb, Op), lambda b: (b, 0, 0)),
        compiler_params=pltpu.CompilerParams(
            dimension_semantics=("parallel",),       # independent batch tiles (v7x 2 TCs)
            # Post-windowing the working set is a few MiB at most; 32 MiB is safe on
            # v5e (16 MiB default scoped), v6e and v7x (64 MiB physical).
            vmem_limit_bytes=32 * 1024 * 1024,
        ),
    )(emb, packed["W_e2h"], packed["b_e2h"], packed["conv_w"],
      packed["conv_b"], packed["W_out"], packed["b_out"])

    # Strip channel/batch padding (free slices in XLA).
    return out.reshape(nb * bb, Op)[:B, :O]                           # [B, bio_out]


def ref_forward(bio, params):
    """Pure-JAX f32 reference of the PyTorch forward (eval mode)."""
    T = bio.shape[1]
    emb = params["E_tok"][bio] + params["E_pos"][:T][None]
    h = emb @ params["W_e2h"] + params["b_e2h"]
    for l in range(params["conv_wa"].shape[0]):
        hp = jnp.pad(h, ((0, 0), (1, 1), (0, 0)))
        x_prev, x_cur, x_next = hp[:, :-2], hp[:, 1:-1], hp[:, 2:]
        a = (x_prev @ params["conv_wa"][l, 0] + x_cur @ params["conv_wa"][l, 1]
             + x_next @ params["conv_wa"][l, 2] + params["conv_ba"][l])
        g = (x_prev @ params["conv_wg"][l, 0] + x_cur @ params["conv_wg"][l, 1]
             + x_next @ params["conv_wg"][l, 2] + params["conv_bg"][l])
        h = (a * jax.nn.sigmoid(g) + h) * SCALE
    conved = h @ params["W_h2e"] + params["b_h2e"]
    last = conved[:, -1, :]
    return last @ params["W_sc"] + params["b_sc"]


if __name__ == "__main__":
    # d_args for the synthetic module
    n_bios, bio_dim, bio_hid, n_layers, bio_out = 4, 32, 32, 2, 2
    B, T, max_len = 2, 8, 16

    key = jax.random.PRNGKey(0)
    ks = jax.random.split(key, 13)

    def init(k, shape, scale=0.1):
        return (scale * jax.random.normal(k, shape)).astype(jnp.float32)

    raw = {
        "E_tok":   init(ks[0], (n_bios, bio_dim)),
        "E_pos":   init(ks[1], (max_len, bio_dim)),
        "W_e2h":   init(ks[2], (bio_dim, bio_hid)),
        "b_e2h":   init(ks[3], (1, bio_hid)),
        # conv weights stored per-tap, channels-last: [n_layers, 3, hid, hid]
        # (torch Conv1d weight [2*hid, hid, 3] split into GLU halves, taps transposed)
        "conv_wa": init(ks[4], (n_layers, 3, bio_hid, bio_hid)),
        "conv_wg": init(ks[5], (n_layers, 3, bio_hid, bio_hid)),
        "conv_ba": init(ks[6], (n_layers, 1, bio_hid)),
        "conv_bg": init(ks[7], (n_layers, 1, bio_hid)),
        "W_h2e":   init(ks[8], (bio_hid, bio_dim)),
        "b_h2e":   init(ks[9], (1, bio_dim)),
        "W_sc":    init(ks[10], (bio_dim, bio_out)),   # stored as torch weight.T
        "b_sc":    init(ks[11], (1, bio_out)),
    }

    bio = jax.random.randint(ks[12], (B, T), 0, n_bios, dtype=jnp.int32)
    bio_lengths = jnp.full((B,), T, dtype=jnp.int32)

    packed = pack_bio_encoder_params(raw)
    out = bio_encoder_conv_forward(bio, bio_lengths, packed)
    out = jax.block_until_ready(out)

    ref = ref_forward(bio, raw)
    assert out.shape == (B, bio_out), out.shape
    # bf16 matmul operands (f32 accumulation) -> loosened tolerance vs. the f32 reference
    assert jnp.allclose(out, ref, atol=2e-2, rtol=2e-2), (out, ref)
    print("KERNEL_OK")
</pallas_src>

<mosaic_0001>
module attributes {stable_mosaic.version = 11 : i64} {
  func.func @bio_encoder_kernel(%arg0: i32, %arg1: memref<1x3x128xbf16, #tpu.memory_space<vmem>>, %arg2: memref<128x128xbf16, #tpu.memory_space<vmem>>, %arg3: memref<1x128xf32, #tpu.memory_space<vmem>>, %arg4: memref<2x384x256xbf16, #tpu.memory_space<vmem>>, %arg5: memref<2x1x256xf32, #tpu.memory_space<vmem>>, %arg6: memref<128x128xf32, #tpu.memory_space<vmem>>, %arg7: memref<1x128xf32, #tpu.memory_space<vmem>>, %arg8: memref<1x1x128xf32, #tpu.memory_space<vmem>>) attributes {dimension_semantics = [#tpu.dimension_semantics<parallel>], iteration_bounds = array<i64: 2>, scalar_prefetch = 0 : i64, scratch_operands = 0 : i64, tpu.core_type = #tpu.core_type<tc>, window_params = [{transform_indices = @transform_0, window_bounds = array<i64: 1, 3, 128>}, {pipeline_mode = #tpu.pipeline_mode<synchronous>, transform_indices = @transform_1, window_bounds = array<i64: 128, 128>}, {pipeline_mode = #tpu.pipeline_mode<synchronous>, transform_indices = @transform_2, window_bounds = array<i64: 1, 128>}, {pipeline_mode = #tpu.pipeline_mode<synchronous>, transform_indices = @transform_3, window_bounds = array<i64: 2, 384, 256>}, {pipeline_mode = #tpu.pipeline_mode<synchronous>, transform_indices = @transform_4, window_bounds = array<i64: 2, 1, 256>}, {pipeline_mode = #tpu.pipeline_mode<synchronous>, transform_indices = @transform_5, window_bounds = array<i64: 128, 128>}, {pipeline_mode = #tpu.pipeline_mode<synchronous>, transform_indices = @transform_6, window_bounds = array<i64: 1, 128>}, {transform_indices = @transform_7, window_bounds = array<i64: 1, 1, 128>}]} {
    %c0 = arith.constant 0 : index
    %c0_0 = arith.constant 0 : index
    %c0_1 = arith.constant 0 : index
    %0 = vector.load %arg1[%c0, %c0_0, %c0_1] : memref<1x3x128xbf16, #tpu.memory_space<vmem>>, vector<1x3x128xbf16>
    %1 = vector.shape_cast %0 : vector<1x3x128xbf16> to vector<3x128xbf16>
    %c0_2 = arith.constant 0 : index
    %c0_3 = arith.constant 0 : index
    %2 = vector.load %arg2[%c0_2, %c0_3] : memref<128x128xbf16, #tpu.memory_space<vmem>>, vector<128x128xbf16>
    %cst = arith.constant dense<0.000000e+00> : vector<3x128xf32>
    %3 = tpu.matmul %1, %2, %cst {dimension_numbers = #tpu.dot_dimension_numbers<[1], [0], [0], [1], [0, 0, 1, 1], [], []>} : vector<3x128xbf16>, vector<128x128xbf16>, vector<3x128xf32> -> vector<3x128xf32>
    %c0_4 = arith.constant 0 : index
    %c0_5 = arith.constant 0 : index
    %4 = vector.load %arg3[%c0_4, %c0_5] : memref<1x128xf32, #tpu.memory_space<vmem>>, vector<1x128xf32>
    %5 = vector.broadcast %4 : vector<1x128xf32> to vector<3x128xf32>
    %6 = arith.addf %3, %5 : vector<3x128xf32>
    %7 = tpu.iota {dimensions = array<i32: 0>} : vector<3x128xi32>
    %c1_i32 = arith.constant 1 : i32
    %8 = tpu.dynamic_rotate %7 by %c1_i32 dim 0 : vector<3x128xi32>, i32 -> vector<3x128xi32>
    %c1_i32_6 = arith.constant 1 : i32
    %9 = vector.broadcast %c1_i32_6 : i32 to vector<3x128xi32>
    %10 = arith.subi %7, %9 : vector<3x128xi32>
    %11 = arith.cmpi eq, %8, %10 : vector<3x128xi32>
    %c1_i32_7 = arith.constant 1 : i32
    %12 = vector.broadcast %c1_i32_7 : i32 to vector<3x128xi32>
    %13 = arith.addi %7, %12 : vector<3x128xi32>
    %14 = arith.cmpi eq, %8, %13 : vector<3x128xi32>
    %c1_i32_8 = arith.constant 1 : i32
    %15 = vector.broadcast %c1_i32_8 : i32 to vector<3x128xi32>
    %16 = arith.cmpi sge, %7, %15 : vector<3x128xi32>
    %17 = arith.extui %16 : vector<3x128xi1> to vector<3x128xi32>
    %18 = arith.sitofp %17 : vector<3x128xi32> to vector<3x128xf32>
    %c2_i32 = arith.constant 2 : i32
    %19 = vector.broadcast %c2_i32 : i32 to vector<3x128xi32>
    %20 = arith.cmpi slt, %7, %19 : vector<3x128xi32>
    %21 = arith.extui %20 : vector<3x128xi1> to vector<3x128xi32>
    %22 = arith.sitofp %21 : vector<3x128xi32> to vector<3x128xf32>
    %23 = arith.truncf %6 : vector<3x128xf32> to vector<3x128xbf16>
    %c1_i32_9 = arith.constant 1 : i32
    %24 = tpu.dynamic_rotate %6 by %c1_i32_9 dim 0 : vector<3x128xf32>, i32 -> vector<3x128xf32>
    %c2_i32_10 = arith.constant 2 : i32
    %25 = tpu.dynamic_rotate %6 by %c2_i32_10 dim 0 : vector<3x128xf32>, i32 -> vector<3x128xf32>
    %26 = arith.select %14, %24, %25 : vector<3x128xi1>, vector<3x128xf32>
    %27 = arith.mulf %26, %22 : vector<3x128xf32>
    %28 = arith.truncf %27 : vector<3x128xf32> to vector<3x128xbf16>
    %29 = arith.select %11, %24, %25 : vector<3x128xi1>, vector<3x128xf32>
    %30 = arith.mulf %29, %18 : vector<3x128xf32>
    %31 = arith.truncf %30 : vector<3x128xf32> to vector<3x128xbf16>
    %32 = tpu.concatenate %28, %23, %31 in 1 : vector<3x128xbf16>, vector<3x128xbf16>, vector<3x128xbf16> -> vector<3x384xbf16>
    %c0_11 = arith.constant 0 : index
    %c0_12 = arith.constant 0 : index
    %c0_13 = arith.constant 0 : index
    %33 = vector.load %arg4[%c0_11, %c0_12, %c0_13] : memref<2x384x256xbf16, #tpu.memory_space<vmem>>, vector<1x384x256xbf16>
    %34 = vector.shape_cast %33 : vector<1x384x256xbf16> to vector<384x256xbf16>
    %cst_14 = arith.constant dense<0.000000e+00> : vector<3x256xf32>
    %35 = tpu.matmul %32, %34, %cst_14 {dimension_numbers = #tpu.dot_dimension_numbers<[1], [0], [0], [1], [0, 0, 1, 1], [], []>} : vector<3x384xbf16>, vector<384x256xbf16>, vector<3x256xf32> -> vector<3x256xf32>
    %c0_15 = arith.constant 0 : index
    %c0_16 = arith.constant 0 : index
    %c0_17 = arith.constant 0 : index
    %36 = vector.load %arg5[%c0_15, %c0_16, %c0_17] : memref<2x1x256xf32, #tpu.memory_space<vmem>>, vector<1x1x256xf32>
    %37 = vector.shape_cast %36 : vector<1x1x256xf32> to vector<1x256xf32>
    %38 = vector.broadcast %37 : vector<1x256xf32> to vector<3x256xf32>
    %39 = arith.addf %35, %38 : vector<3x256xf32>
    %40 = vector.extract_strided_slice %39 {offsets = [0, 0], sizes = [3, 128], strides = [1, 1]} : vector<3x256xf32> to vector<3x128xf32>
    %41 = vector.extract_strided_slice %39 {offsets = [0, 128], sizes = [3, 128], strides = [1, 1]} : vector<3x256xf32> to vector<3x128xf32>
    %42 = arith.negf %41 : vector<3x128xf32>
    %43 = math.exp %42 : vector<3x128xf32>
    %cst_18 = arith.constant 1.000000e+00 : f32
    %44 = vector.broadcast %cst_18 : f32 to vector<3x128xf32>
    %45 = arith.addf %44, %43 : vector<3x128xf32>
    %46 = arith.divf %44, %45 : vector<3x128xf32>
    %47 = arith.mulf %40, %46 : vector<3x128xf32>
    %48 = arith.addf %47, %6 : vector<3x128xf32>
    %cst_19 = arith.constant 0.707106769 : f32
    %49 = vector.broadcast %cst_19 : f32 to vector<3x128xf32>
    %50 = arith.mulf %48, %49 : vector<3x128xf32>
    %51 = arith.truncf %50 : vector<3x128xf32> to vector<3x128xbf16>
    %c1_i32_20 = arith.constant 1 : i32
    %52 = tpu.dynamic_rotate %50 by %c1_i32_20 dim 0 : vector<3x128xf32>, i32 -> vector<3x128xf32>
    %c2_i32_21 = arith.constant 2 : i32
    %53 = tpu.dynamic_rotate %50 by %c2_i32_21 dim 0 : vector<3x128xf32>, i32 -> vector<3x128xf32>
    %54 = arith.select %14, %52, %53 : vector<3x128xi1>, vector<3x128xf32>
    %55 = arith.mulf %54, %22 : vector<3x128xf32>
    %56 = arith.truncf %55 : vector<3x128xf32> to vector<3x128xbf16>
    %57 = arith.select %11, %52, %53 : vector<3x128xi1>, vector<3x128xf32>
    %58 = arith.mulf %57, %18 : vector<3x128xf32>
    %59 = arith.truncf %58 : vector<3x128xf32> to vector<3x128xbf16>
    %60 = tpu.concatenate %56, %51, %59 in 1 : vector<3x128xbf16>, vector<3x128xbf16>, vector<3x128xbf16> -> vector<3x384xbf16>
    %c1 = arith.constant 1 : index
    %c0_22 = arith.constant 0 : index
    %c0_23 = arith.constant 0 : index
    %61 = vector.load %arg4[%c1, %c0_22, %c0_23] : memref<2x384x256xbf16, #tpu.memory_space<vmem>>, vector<1x384x256xbf16>
    %62 = vector.shape_cast %61 : vector<1x384x256xbf16> to vector<384x256xbf16>
    %cst_24 = arith.constant dense<0.000000e+00> : vector<3x256xf32>
    %63 = tpu.matmul %60, %62, %cst_24 {dimension_numbers = #tpu.dot_dimension_numbers<[1], [0], [0], [1], [0, 0, 1, 1], [], []>} : vector<3x384xbf16>, vector<384x256xbf16>, vector<3x256xf32> -> vector<3x256xf32>
    %c1_25 = arith.constant 1 : index
    %c0_26 = arith.constant 0 : index
    %c0_27 = arith.constant 0 : index
    %64 = vector.load %arg5[%c1_25, %c0_26, %c0_27] : memref<2x1x256xf32, #tpu.memory_space<vmem>>, vector<1x1x256xf32>
    %65 = vector.shape_cast %64 : vector<1x1x256xf32> to vector<1x256xf32>
    %66 = vector.broadcast %65 : vector<1x256xf32> to vector<3x256xf32>
    %67 = arith.addf %63, %66 : vector<3x256xf32>
    %68 = vector.extract_strided_slice %67 {offsets = [0, 0], sizes = [3, 128], strides = [1, 1]} : vector<3x256xf32> to vector<3x128xf32>
    %69 = vector.extract_strided_slice %67 {offsets = [0, 128], sizes = [3, 128], strides = [1, 1]} : vector<3x256xf32> to vector<3x128xf32>
    %70 = arith.negf %69 : vector<3x128xf32>
    %71 = math.exp %70 : vector<3x128xf32>
    %cst_28 = arith.constant 1.000000e+00 : f32
    %72 = vector.broadcast %cst_28 : f32 to vector<3x128xf32>
    %73 = arith.addf %72, %71 : vector<3x128xf32>
    %74 = arith.divf %72, %73 : vector<3x128xf32>
    %75 = arith.mulf %68, %74 : vector<3x128xf32>
    %76 = arith.addf %75, %50 : vector<3x128xf32>
    %cst_29 = arith.constant 0.707106769 : f32
    %77 = vector.broadcast %cst_29 : f32 to vector<3x128xf32>
    %78 = arith.mulf %76, %77 : vector<3x128xf32>
    %79 = vector.extract_strided_slice %78 {offsets = [0, 0], sizes = [1, 128], strides = [1, 1]} : vector<3x128xf32> to vector<1x128xf32>
    %c0_30 = arith.constant 0 : index
    %c0_31 = arith.constant 0 : index
    %80 = vector.load %arg6[%c0_30, %c0_31] : memref<128x128xf32, #tpu.memory_space<vmem>>, vector<128x128xf32>
    %cst_32 = arith.constant dense<0.000000e+00> : vector<1x128xf32>
    %81 = tpu.matmul %79, %80, %cst_32 {dimension_numbers = #tpu.dot_dimension_numbers<[1], [0], [0], [1], [0, 0, 1, 1], [], []>} : vector<1x128xf32>, vector<128x128xf32>, vector<1x128xf32> -> vector<1x128xf32>
    %c0_33 = arith.constant 0 : index
    %c0_34 = arith.constant 0 : index
    %82 = vector.load %arg7[%c0_33, %c0_34] : memref<1x128xf32, #tpu.memory_space<vmem>>, vector<1x128xf32>
    %83 = arith.addf %81, %82 : vector<1x128xf32>
    %c0_35 = arith.constant 0 : index
    %c0_36 = arith.constant 0 : index
    %c0_37 = arith.constant 0 : index
    %84 = vector.load %arg8[%c0_35, %c0_36, %c0_37] : memref<1x1x128xf32, #tpu.memory_space<vmem>>, vector<1x1x128xf32>
    %85 = vector.shape_cast %84 : vector<1x1x128xf32> to vector<1x128xf32>
    %86 = vector.shape_cast %83 : vector<1x128xf32> to vector<1x1x128xf32>
    tpu.vector_store %arg8[%c0_35, %c0_36, %c0_37], %86 {strides = array<i32>} : memref<1x1x128xf32, #tpu.memory_space<vmem>>, vector<1x1x128xf32>,
    return
  }
  func.func @transform_0(%arg0: i32) -> (i32, i32, i32) {
    %c0_i32 = arith.constant 0 : i32
    %c0_i32_0 = arith.constant 0 : i32
    %c0_i32_1 = arith.constant 0 : i32
    return %arg0, %c0_i32, %c0_i32_0 : i32, i32, i32
  }
  func.func @transform_1(%arg0: i32) -> (i32, i32) {
    %c0_i32 = arith.constant 0 : i32
    %c0_i32_0 = arith.constant 0 : i32
    %c0_i32_1 = arith.constant 0 : i32
    return %c0_i32, %c0_i32_0 : i32, i32
  }
  func.func @transform_2(%arg0: i32) -> (i32, i32) {
    %c0_i32 = arith.constant 0 : i32
    %c0_i32_0 = arith.constant 0 : i32
    %c0_i32_1 = arith.constant 0 : i32
    return %c0_i32, %c0_i32_0 : i32, i32
  }
  func.func @transform_3(%arg0: i32) -> (i32, i32, i32) {
    %c0_i32 = arith.constant 0 : i32
    %c0_i32_0 = arith.constant 0 : i32
    %c0_i32_1 = arith.constant 0 : i32
    %c0_i32_2 = arith.constant 0 : i32
    return %c0_i32, %c0_i32_0, %c0_i32_1 : i32, i32, i32
  }
  func.func @transform_4(%arg0: i32) -> (i32, i32, i32) {
    %c0_i32 = arith.constant 0 : i32
    %c0_i32_0 = arith.constant 0 : i32
    %c0_i32_1 = arith.constant 0 : i32
    %c0_i32_2 = arith.constant 0 : i32
    return %c0_i32, %c0_i32_0, %c0_i32_1 : i32, i32, i32
  }
  func.func @transform_5(%arg0: i32) -> (i32, i32) {
    %c0_i32 = arith.constant 0 : i32
    %c0_i32_0 = arith.constant 0 : i32
    %c0_i32_1 = arith.constant 0 : i32
    return %c0_i32, %c0_i32_0 : i32, i32
  }
  func.func @transform_6(%arg0: i32) -> (i32, i32) {
    %c0_i32 = arith.constant 0 : i32
    %c0_i32_0 = arith.constant 0 : i32
    %c0_i32_1 = arith.constant 0 : i32
    return %c0_i32, %c0_i32_0 : i32, i32
  }
  func.func @transform_7(%arg0: i32) -> (i32, i32, i32) {
    %c0_i32 = arith.constant 0 : i32
    %c0_i32_0 = arith.constant 0 : i32
    %c0_i32_1 = arith.constant 0 : i32
    return %arg0, %c0_i32, %c0_i32_0 : i32, i32, i32
  }
}

</mosaic_0001>

<llo_original>
// kernel: tpu_custom_call.1
$region0: #{tpu_custom_call.1}
  #allocation0 [shape = 'u32[]', space=smem, size = 0x4, offset = 0x4, fixed_abs, tag = 'smem constant byte address 0x4 - core index']
  #allocation1 [shape = 'u32[72,128]{1,0:T(1,128)}', space=vmem, size = 0x9000, scoped, tag = 'internal scratch']
  %s0 = inlined_call_operand.vmem [shape: bf16[2,3,128], index: 0, kind: input, shape index: {}]
  %s1 = inlined_call_operand.hbm [shape: bf16[128,128], index: 1, kind: input, shape index: {}]
  %s2 = inlined_call_operand.vmem [shape: f32[1,128], index: 2, kind: input, shape index: {}]
  %s3 = inlined_call_operand.hbm [shape: bf16[2,384,256], index: 3, kind: input, shape index: {}]
  %s4 = inlined_call_operand.vmem [shape: f32[2,1,256], index: 4, kind: input, shape index: {}]
  %s5 = inlined_call_operand.hbm [shape: f32[128,128], index: 5, kind: input, shape index: {}]
  %s6 = inlined_call_operand.vmem [shape: f32[1,128], index: 6, kind: input, shape index: {}]
  %s7 = inlined_call_operand.hbm [shape: f32[2,1,128], index: 7, kind: output, shape index: {}]
  %s8 = sld [smem:[#allocation0]]
  $region73: #{tpu_custom_call.1} parent=0
    _
  %s10 = ssub.s32 1, %s8
  %s11 = scalar_select 0, %s10, %s8
  $region1: #{tpu_custom_call.1} parent=0
    #allocation2 [shape = 'u8[32768]{0}', space=vmem, size = 0x8000, scoped, tag = 'input window, operand 1, single buffered']
    #allocation3 [shape = 's32[2]{0}', space=sflag, size = 0x8, scoped, tag = 'scoped memory for tpu_custom_call.1']
    #allocation4 [shape = 's32[2]{0}', space=sflag, size = 0x8, scoped, tag = 'scoped memory for tpu_custom_call.1']
    #allocation5 [shape = 'u8[393216]{0}', space=vmem, size = 0x60000, scoped, tag = 'input window, operand 3, single buffered']
    #allocation6 [shape = 's32[1]{0}', space=sflag, size = 0x4, scoped, tag = 'scoped memory for tpu_custom_call.1']
    #allocation7 [shape = 'u8[65536]{0}', space=vmem, size = 0x10000, scoped, tag = 'input window, operand 5, single buffered']
    #allocation8 [shape = 'u8[1024]{0}', space=vmem, size = 0x400, scoped, tag = 'output window, operand 0']
    %12 = vsyncpa [#allocation3], 0
    %13 = vsyncpa [#allocation6], 0
    %14 = vsyncpa [#allocation4], 0
    %s15 = scalar_lea.sflag [#allocation4], 1
    %16 = vsyncpa %s15, 0
    loop: start=0, step=1, limit=4
    $region2: #{tpu_custom_call.1} parent=1 // loop_pre_header
      _
    $region3: #{tpu_custom_call.1} parent=1 // loop_header
      %s18 = sphi 0, %s22
      %p19 = scmp.ge.s32.totalorder %s18, 4
      %s28 = sphi 0, %s30
      %s31 = sphi 0, %s28
      %s32 = sphi 0, %s31
      %s48 = sphi 0, %s32
      %s52 = sphi 0, %s52
      %s54 = sphi 0, %s52
      %s55 = sphi 0, %s54
      %s69 = sphi 0, %s55
      %s73 = sphi 0, %s73
      %s75 = sphi 0, %s73
      %s76 = sphi 0, %s75
      %s90 = sphi 0, %s76
      %s94 = sphi 0, %s94
      %s96 = sphi 0, %s94
      %s97 = sphi 0, %s96
      %s111 = sphi 0, %s97
      %s115 = sphi 0, %s115
      %s117 = sphi 0, %s115
      %s118 = sphi 0, %s117
      %s132 = sphi 0, %s118
      %s136 = sphi 0, %s136
      %s138 = sphi 0, %s136
      %s139 = sphi 0, %s138
      %s153 = sphi 0, %s139
      %s157 = sphi 0, %s157
      %s159 = sphi 0, %s157
      %s160 = sphi 0, %s159
      %s174 = sphi 0, %s160
      %s180 = sphi 0, %s182
      %s183 = sphi 0, %s180
      %s184 = sphi 0, %s183
      %s200 = sphi 0, %s184
    $region4: #{tpu_custom_call.1} parent=1 // loop_header_branch
      %21 = sbr.rel (%p19) target = $region8
    $region5: #{tpu_custom_call.1} parent=1 // loop_body
      %s23 = ssub.s32 %s18, 1
      %s24 = ssub.s32 %s18, 2
      %s25 = sadd.s32 %s18, 1
      %s26 = ssub.s32 %s18, %s25
      %p27 = scmp.eq.s32.totalorder %s26, 0
      %s29 = sadd.s32 %s28, 1
      %s30 = scalar_select %p27, %s28, %s29
      %p33 = pneg %p27
      %p34 = scmp.eq.s32.totalorder %s18, 1
      %p35 = por %p33, %p34
      %p36 = scmp.ne.s32.totalorder %s28, %s31
      %p37 = scmp.eq.s32.totalorder %s18, 0
      %p38 = por %p36, %p37
      %p39 = scmp.ne.s32.totalorder %s28, %s31
      %p40 = scmp.eq.s32.totalorder %s23, 1
      %p41 = por %p39, %p40
      %p42 = scmp.ne.s32.totalorder %s31, %s32
      %p43 = scmp.eq.s32.totalorder %s23, 0
      %p44 = por %p42, %p43
      %p45 = scmp.ne.s32.totalorder %s31, %s32
      %p46 = scmp.eq.s32.totalorder %s24, 1
      %p47 = por %p45, %p46
      %p49 = scmp.ne.s32.totalorder %s32, %s48
      %p50 = scmp.eq.s32.totalorder %s24, 0
      %p51 = por %p49, %p50
      %s53 = sadd.s32 %s52, 1
      %p56 = scmp.eq.s32.totalorder %s18, 1
      %p57 = scmp.ne.s32.totalorder %s52, %s54
      %p58 = scmp.eq.s32.totalorder %s18, 0
      %p59 = por %p57, %p58
      %p60 = scmp.ne.s32.totalorder %s52, %s54
      %p61 = scmp.eq.s32.totalorder %s23, 1
      %p62 = por %p60, %p61
      %p63 = scmp.ne.s32.totalorder %s54, %s55
      %p64 = scmp.eq.s32.totalorder %s23, 0
      %p65 = por %p63, %p64
      %p66 = scmp.ne.s32.totalorder %s54, %s55
      %p67 = scmp.eq.s32.totalorder %s24, 1
      %p68 = por %p66, %p67
      %p70 = scmp.ne.s32.totalorder %s55, %s69
      %p71 = scmp.eq.s32.totalorder %s24, 0
      %p72 = por %p70, %p71
      %s74 = sadd.s32 %s73, 1
      %p77 = scmp.eq.s32.totalorder %s18, 1
      %p78 = scmp.ne.s32.totalorder %s73, %s75
      %p79 = scmp.eq.s32.totalorder %s18, 0
      %p80 = por %p78, %p79
      %p81 = scmp.ne.s32.totalorder %s73, %s75
      %p82 = scmp.eq.s32.totalorder %s23, 1
      %p83 = por %p81, %p82
      %p84 = scmp.ne.s32.totalorder %s75, %s76
      %p85 = scmp.eq.s32.totalorder %s23, 0
      %p86 = por %p84, %p85
      %p87 = scmp.ne.s32.totalorder %s75, %s76
      %p88 = scmp.eq.s32.totalorder %s24, 1
      %p89 = por %p87, %p88
      %p91 = scmp.ne.s32.totalorder %s76, %s90
      %p92 = scmp.eq.s32.totalorder %s24, 0
      %p93 = por %p91, %p92
      %s95 = sadd.s32 %s94, 1
      %p98 = scmp.eq.s32.totalorder %s18, 1
      %p99 = scmp.ne.s32.totalorder %s94, %s96
      %p100 = scmp.eq.s32.totalorder %s18, 0
      %p101 = por %p99, %p100
      %p102 = scmp.ne.s32.totalorder %s94, %s96
      %p103 = scmp.eq.s32.totalorder %s23, 1
      %p104 = por %p102, %p103
      %p105 = scmp.ne.s32.totalorder %s96, %s97
      %p106 = scmp.eq.s32.totalorder %s23, 0
      %p107 = por %p105, %p106
      %p108 = scmp.ne.s32.totalorder %s96, %s97
      %p109 = scmp.eq.s32.totalorder %s24, 1
      %p110 = por %p108, %p109
      %p112 = scmp.ne.s32.totalorder %s97, %s111
      %p113 = scmp.eq.s32.totalorder %s24, 0
      %p114 = por %p112, %p113
      %s116 = sadd.s32 %s115, 1
      %p119 = scmp.eq.s32.totalorder %s18, 1
      %p120 = scmp.ne.s32.totalorder %s115, %s117
      %p121 = scmp.eq.s32.totalorder %s18, 0
      %p122 = por %p120, %p121
      %p123 = scmp.ne.s32.totalorder %s115, %s117
      %p124 = scmp.eq.s32.totalorder %s23, 1
      %p125 = por %p123, %p124
      %p126 = scmp.ne.s32.totalorder %s117, %s118
      %p127 = scmp.eq.s32.totalorder %s23, 0
      %p128 = por %p126, %p127
      %p129 = scmp.ne.s32.totalorder %s117, %s118
      %p130 = scmp.eq.s32.totalorder %s24, 1
      %p131 = por %p129, %p130
      %p133 = scmp.ne.s32.totalorder %s118, %s132
      %p134 = scmp.eq.s32.totalorder %s24, 0
      %p135 = por %p133, %p134
      %s137 = sadd.s32 %s136, 1
      %p140 = scmp.eq.s32.totalorder %s18, 1
      %p141 = scmp.ne.s32.totalorder %s136, %s138
      %p142 = scmp.eq.s32.totalorder %s18, 0
      %p143 = por %p141, %p142
      %p144 = scmp.ne.s32.totalorder %s136, %s138
      %p145 = scmp.eq.s32.totalorder %s23, 1
      %p146 = por %p144, %p145
      %p147 = scmp.ne.s32.totalorder %s138, %s139
      %p148 = scmp.eq.s32.totalorder %s23, 0
      %p149 = por %p147, %p148
      %p150 = scmp.ne.s32.totalorder %s138, %s139
      %p151 = scmp.eq.s32.totalorder %s24, 1
      %p152 = por %p150, %p151
      %p154 = scmp.ne.s32.totalorder %s139, %s153
      %p155 = scmp.eq.s32.totalorder %s24, 0
      %p156 = por %p154, %p155
      %s158 = sadd.s32 %s157, 1
      %p161 = scmp.eq.s32.totalorder %s18, 1
      %p162 = scmp.ne.s32.totalorder %s157, %s159
      %p163 = scmp.eq.s32.totalorder %s18, 0
      %p164 = por %p162, %p163
      %p165 = scmp.ne.s32.totalorder %s157, %s159
      %p166 = scmp.eq.s32.totalorder %s23, 1
      %p167 = por %p165, %p166
      %p168 = scmp.ne.s32.totalorder %s159, %s160
      %p169 = scmp.eq.s32.totalorder %s23, 0
      %p170 = por %p168, %p169
      %p171 = scmp.ne.s32.totalorder %s159, %s160
      %p172 = scmp.eq.s32.totalorder %s24, 1
      %p173 = por %p171, %p172
      %p175 = scmp.ne.s32.totalorder %s160, %s174
      %p176 = scmp.eq.s32.totalorder %s24, 0
      %p177 = por %p175, %p176
      %s178 = ssub.s32 %s18, %s25
      %p179 = scmp.eq.s32.totalorder %s178, 0
      %s181 = sadd.s32 %s180, 1
      %s182 = scalar_select %p179, %s180, %s181
      %p185 = pneg %p179
      %p186 = scmp.eq.s32.totalorder %s18, 1
      %p187 = por %p185, %p186
      %p188 = scmp.ne.s32.totalorder %s180, %s183
      %p189 = scmp.eq.s32.totalorder %s18, 0
      %p190 = por %p188, %p189
      %p191 = scmp.ne.s32.totalorder %s180, %s183
      %p192 = scmp.eq.s32.totalorder %s23, 1
      %p193 = por %p191, %p192
      %p194 = scmp.ne.s32.totalorder %s183, %s184
      %p195 = scmp.eq.s32.totalorder %s23, 0
      %p196 = por %p194, %p195
      %p197 = scmp.ne.s32.totalorder %s183, %s184
      %p198 = scmp.eq.s32.totalorder %s24, 1
      %p199 = por %p197, %p198
      %p201 = scmp.ne.s32.totalorder %s184, %s200
      %p202 = scmp.eq.s32.totalorder %s24, 0
      %p203 = por %p201, %p202
      %p204 = scmp.le.s32.totalorder 1, %s18
      %p205 = scmp.lt.s32.totalorder %s18, 3
      %p206 = pnand %p204, %p205
      %p207 = pneg %p206
      // Predicated region
      $region9: #{tpu_custom_call.1} parent=5 // pred_check
        _
      $region10: #{tpu_custom_call.1} parent=5 // pred_check_branch
        %209 = sbr.rel (%p206) target = $region12
      $region11: #{tpu_custom_call.1} parent=5 // pred_region
        %s210 = ssub.s32 %s18, 1
        // Predicated region
        $region13: #{tpu_custom_call.1} parent=11 // pred_check
          %p211 = pneg %p65
        $region14: #{tpu_custom_call.1} parent=11 // pred_check_branch
          %213 = sbr.rel (%p211) target = $region16
        $region15: #{tpu_custom_call.1} parent=11 // pred_region
          %215 = vsyncadd [#allocation3], 0
          %s216 = sshll.u32 %s1, 4
          %s217 = int_to_ptr.hbm [resolvable:$true] %s216
          %s218 = sshll.u32 [#allocation2], 4
          %s219 = int_to_ptr.vmem [resolvable:$true] %s218
          %224 = dma.hbm_to_vmem [thread:$0]  %s217, 1024, %s219, [#allocation3], 64, 64, 4
        $region16: #{tpu_custom_call.1} parent=11 // pred_fallthru
          _
        // Predicated region
        $region17: #{tpu_custom_call.1} parent=11 // pred_check
          %p225 = pneg %p86
        $region18: #{tpu_custom_call.1} parent=11 // pred_check_branch
          %227 = sbr.rel (%p225) target = $region20
        $region19: #{tpu_custom_call.1} parent=11 // pred_region
          _
        $region20: #{tpu_custom_call.1} parent=11 // pred_fallthru
          _
        // Predicated region
        $region21: #{tpu_custom_call.1} parent=11 // pred_check
          %p228 = pneg %p107
        $region22: #{tpu_custom_call.1} parent=11 // pred_check_branch
          %230 = sbr.rel (%p228) target = $region24
        $region23: #{tpu_custom_call.1} parent=11 // pred_region
          %232 = vsyncadd [#allocation6], 0
          %s233 = sshll.u32 %s3, 4
          %s234 = int_to_ptr.hbm [resolvable:$true] %s233
          %s235 = sshll.u32 [#allocation5], 4
          %s236 = int_to_ptr.vmem [resolvable:$true] %s235
          %241 = dma.hbm_to_vmem [thread:$0]  %s234, 12288, %s236, [#allocation6], 128, 128, 8
        $region24: #{tpu_custom_call.1} parent=11 // pred_fallthru
          _
        // Predicated region
        $region25: #{tpu_custom_call.1} parent=11 // pred_check
          %p242 = pneg %p128
        $region26: #{tpu_custom_call.1} parent=11 // pred_check_branch
          %244 = sbr.rel (%p242) target = $region28
        $region27: #{tpu_custom_call.1} parent=11 // pred_region
          _
        $region28: #{tpu_custom_call.1} parent=11 // pred_fallthru
          _
        // Predicated region
        $region29: #{tpu_custom_call.1} parent=11 // pred_check
          %p245 = pneg %p149
        $region30: #{tpu_custom_call.1} parent=11 // pred_check_branch
          %247 = sbr.rel (%p245) target = $region32
        $region31: #{tpu_custom_call.1} parent=11 // pred_region
          %249 = vsyncadd [#allocation6], 0
          %s250 = sshll.u32 %s5, 4
          %s251 = int_to_ptr.hbm [resolvable:$true] %s250
          %s252 = sshll.u32 [#allocation7], 4
          %s253 = int_to_ptr.vmem [resolvable:$true] %s252
          %258 = dma.hbm_to_vmem [thread:$0]  %s251, 2048, %s253, [#allocation6], 128, 128, 8
        $region32: #{tpu_custom_call.1} parent=11 // pred_fallthru
          _
        // Predicated region
        $region33: #{tpu_custom_call.1} parent=11 // pred_check
          %p259 = pneg %p170
        $region34: #{tpu_custom_call.1} parent=11 // pred_check_branch
          %261 = sbr.rel (%p259) target = $region36
        $region35: #{tpu_custom_call.1} parent=11 // pred_region
          _
        $region36: #{tpu_custom_call.1} parent=11 // pred_fallthru
          _
      $region12: #{tpu_custom_call.1} parent=5 // pred_fallthru
        _
      %p262 = scmp.lt.s32.totalorder %s18, 2
      // Predicated region
      $region37: #{tpu_custom_call.1} parent=5 // pred_check
        %p263 = pneg %p262
      $region38: #{tpu_custom_call.1} parent=5 // pred_check_branch
        %265 = sbr.rel (%p263) target = $region40
      $region39: #{tpu_custom_call.1} parent=5 // pred_region
        // Predicated region
        $region41: #{tpu_custom_call.1} parent=39 // pred_check
          %p266 = pneg %p38
        $region42: #{tpu_custom_call.1} parent=39 // pred_check_branch
          %268 = sbr.rel (%p266) target = $region44
        $region43: #{tpu_custom_call.1} parent=39 // pred_region
          %p269 = scmp.lt.s32.totalorder %s18, 1
          %s270 = scalar_select %p269, %s18, 1
          %s271 = smul.addr %s270, 2
          %s272 = scalar_lea.vmem %s0, %s271
        $region44: #{tpu_custom_call.1} parent=39 // pred_fallthru
          _
      $region40: #{tpu_custom_call.1} parent=5 // pred_fallthru
        _
      %p273 = scmp.le.s32.totalorder 1, %s18
      %p274 = scmp.lt.s32.totalorder %s18, 3
      %p275 = pnand %p273, %p274
      %p276 = pneg %p275
      // Predicated region
      $region45: #{tpu_custom_call.1} parent=5 // pred_check
        _
      $region46: #{tpu_custom_call.1} parent=5 // pred_check_branch
        %278 = sbr.rel (%p275) target = $region48
      $region47: #{tpu_custom_call.1} parent=5 // pred_region
        %s279 = ssub.s32 %s18, 1
        // Predicated region
        $region49: #{tpu_custom_call.1} parent=47 // pred_check
          %p280 = pneg %p65
        $region50: #{tpu_custom_call.1} parent=47 // pred_check_branch
          %282 = sbr.rel (%p280) target = $region52
        $region51: #{tpu_custom_call.1} parent=47 // pred_region
          %284 = dma.done [#allocation3], 1024
        $region52: #{tpu_custom_call.1} parent=47 // pred_fallthru
          _
        // Predicated region
        $region53: #{tpu_custom_call.1} parent=47 // pred_check
          %p285 = pneg %p107
        $region54: #{tpu_custom_call.1} parent=47 // pred_check_branch
          %287 = sbr.rel (%p285) target = $region56
        $region55: #{tpu_custom_call.1} parent=47 // pred_region
          %289 = dma.done [#allocation6], 12288
        $region56: #{tpu_custom_call.1} parent=47 // pred_fallthru
          _
        // Predicated region
        $region57: #{tpu_custom_call.1} parent=47 // pred_check
          %p290 = pneg %p149
        $region58: #{tpu_custom_call.1} parent=47 // pred_check_branch
          %292 = sbr.rel (%p290) target = $region60
        $region59: #{tpu_custom_call.1} parent=47 // pred_region
          %294 = dma.done [#allocation6], 2048
        $region60: #{tpu_custom_call.1} parent=47 // pred_fallthru
          _
        %p295 = scmp.lt.s32.totalorder %s23, 1
        %s296 = scalar_select %p295, %s23, 1
        %s297 = smul.addr %s296, 2
        %s298 = scalar_lea.vmem %s0, %s297
        %p299 = pneg %p44
        %p300 = pneg %p41
        %p301 = pneg %p65
        %p302 = pneg %p62
        %p303 = pneg %p86
        %p304 = pneg %p83
        %p305 = pneg %p107
        %p306 = pneg %p104
        %p307 = pneg %p128
        %p308 = pneg %p125
        %p309 = pneg %p149
        %p310 = pneg %p146
        %p311 = pneg %p170
        %p312 = pneg %p167
        %p313 = pneg %p196
        %p314 = pneg %p193
        %s315 = sand.u32 %s183, 1
        %s316 = scalar_lea.sflag [#allocation4], %s315
        %s317 = sand.u32 %s183, 1
        %s318 = scalar_lea.vmem [#allocation8], %s317
        %p319 = scmp.lt.s32.totalorder %s23, 1
        %s320 = scalar_select %p319, %s23, 1
        %s321 = smul.addr %s320, 2
        %s322 = scalar_lea.vmem %s0, %s321
        %v323 = vld [vmem:[%s322] sm:$0x3]
        %v324 = vld [vmem:[#allocation2] sm:$0xf]
        %v325 = vld [vmem:[#allocation2 + $0x4] sm:$0xf]
        %v326 = vld [vmem:[#allocation2 + $0x8] sm:$0xf]
        %v327 = vld [vmem:[#allocation2 + $0xc] sm:$0xf]
        %v328 = vld [vmem:[#allocation2 + $0x10] sm:$0xf]
        %v329 = vld [vmem:[#allocation2 + $0x14] sm:$0xf]
        %v330 = vld [vmem:[#allocation2 + $0x18] sm:$0xf]
        %v331 = vld [vmem:[#allocation2 + $0x1c] sm:$0xf]
        %v332 = vld [vmem:[#allocation2 + $0x20] sm:$0xf]
        %v333 = vld [vmem:[#allocation2 + $0x24] sm:$0xf]
        %v334 = vld [vmem:[#allocation2 + $0x28] sm:$0xf]
        %v335 = vld [vmem:[#allocation2 + $0x2c] sm:$0xf]
        %v336 = vld [vmem:[#allocation2 + $0x30] sm:$0xf]
        %v337 = vld [vmem:[#allocation2 + $0x34] sm:$0xf]
        %v338 = vld [vmem:[#allocation2 + $0x38] sm:$0xf]
        %v339 = vld [vmem:[#allocation2 + $0x3c] sm:$0xf]
        %v340 = vld [vmem:[%s2] sm:$0x1]
        %v342 = vperm.slane %v340, 0
        %v360 = vunpack.c.l.b16 %v324
        %v361 = vunpack.c.l.b16 %v325
        %v362 = vunpack.c.l.b16 %v326
        %v363 = vunpack.c.l.b16 %v327
        %v364 = vunpack.c.l.b16 %v328
        %v365 = vunpack.c.l.b16 %v329
        %v366 = vunpack.c.l.b16 %v330
        %v367 = vunpack.c.l.b16 %v331
        %v368 = vunpack.c.l.b16 %v332
        %v369 = vunpack.c.l.b16 %v333
        %v370 = vunpack.c.l.b16 %v334
        %v371 = vunpack.c.l.b16 %v335
        %v372 = vunpack.c.l.b16 %v336
        %v373 = vunpack.c.l.b16 %v337
        %v374 = vunpack.c.l.b16 %v338
        %v375 = vunpack.c.l.b16 %v339
        %v376 = vpack.c.b16 %v361, %v360
        %v377 = vpack.c.b16 %v363, %v362
        %v378 = vpack.c.b16 %v365, %v364
        %v379 = vpack.c.b16 %v367, %v366
        %v380 = vpack.c.b16 %v369, %v368
        %v381 = vpack.c.b16 %v371, %v370
        %v382 = vpack.c.b16 %v373, %v372
        %v383 = vpack.c.b16 %v375, %v374
        %392 = vmatpush.bf16.msra.mxu0 %v383
        %393 = vmatpush.bf16.msra.mxu0 %v382
        %394 = vmatpush.bf16.msra.mxu0 %v381
        %395 = vmatpush.bf16.msra.mxu0 %v380
        %396 = vmatpush.bf16.msra.mxu0 %v379
        %397 = vmatpush.bf16.msra.mxu0 %v378
        %398 = vmatpush.bf16.msra.mxu0 %v377
        %399 = vmatpush.bf16.msra.mxu0 %v376
        %400 = vmatmul.bf16.gmra.mxu0 %v323
        %v401 = vpop.f32.mrf.mxu0
        %v402 = vadd.f32 %v342, %v401
        %v403 = vpop.f32.mrf.mxu0
        %404 = vdwg.mxu0
        %v405 = vlaneseq
        %v406 = vshrl.u32 %v405, 7
        %vm407 = vcmask 1047555
        %v408 = vrot.slane %v406, 5
        %v409 = vsel %vm407, %v408, %v406
        %v410 = vrot.slane %v409, 5
        %v411 = vsel %vm407, %v410, %v406
        %v412 = vsub.s32 %v406, 1
        %v413 = vrot.slane %v412, 6
        %vm414 = vcmp.eq.s32.totalorder %v411, %v413
        %v415 = vadd.s32 %v406, 1
        %v416 = vrot.slane %v415, 6
        %vm417 = vcmp.eq.s32.totalorder %v411, %v416
        %vm418 = vcmp.ge.s32.totalorder %v406, 1
        %v419 = vsel %vm418, 1, 0
        %v420 = vcvt.s32.f32 %v419
        %vm421 = vcmp.lt.s32.totalorder %v406, 2
        %v422 = vsel %vm421, 1, 0
        %v423 = vcvt.s32.f32 %v422
        %v424 = vpack.c.bf16 %v402, %v402
        %v425 = vrot.slane %v402, 5
        %v426 = vsel %vm407, %v425, %v402
        %v427 = vrot.slane %v426, 5
        %v428 = vsel %vm407, %v427, %v402
        %v430 = vrot.slane %v428, 7
        %v432 = vsel %vm417, %v428, %v430
        %v434 = vrot.slane %v423, 6
        %v436 = vmul.f32 %v432, %v434
        %v437 = vpack.c.bf16 %v436, %v436
        %v438 = vsel %vm414, %v428, %v430
        %v440 = vrot.slane %v420, 6
        %v442 = vmul.f32 %v438, %v440
        %v443 = vpack.c.bf16 %v442, %v442
        %v445 = vunpack.c.l.b16 %v424
        %v446 = vpack.c.b16 %v445, %v445
        %v447 = vrot.slane %v446, 7
        %v448 = vld [vmem:[#allocation5] sm:$0xff]
        %v449 = vld [vmem:[#allocation5 + $0x8] sm:$0xff]
        %v450 = vld [vmem:[#allocation5 + $0x10] sm:$0xff]
        %v451 = vld [vmem:[#allocation5 + $0x18] sm:$0xff]
        %v452 = vld [vmem:[#allocation5 + $0x20] sm:$0xff]
        %v453 = vld [vmem:[#allocation5 + $0x28] sm:$0xff]
        %v454 = vld [vmem:[#allocation5 + $0x30] sm:$0xff]
        %v455 = vld [vmem:[#allocation5 + $0x38] sm:$0xff]
        %v456 = vld [vmem:[#allocation5 + $0x40] sm:$0xff]
        %v457 = vld [vmem:[#allocation5 + $0x48] sm:$0xff]
        %v458 = vld [vmem:[#allocation5 + $0x50] sm:$0xff]
        %v459 = vld [vmem:[#allocation5 + $0x58] sm:$0xff]
        %v460 = vld [vmem:[#allocation5 + $0x60] sm:$0xff]
        %v461 = vld [vmem:[#allocation5 + $0x68] sm:$0xff]
        %v462 = vld [vmem:[#allocation5 + $0x70] sm:$0xff]
        %v463 = vld [vmem:[#allocation5 + $0x78] sm:$0xff]
        %v464 = vld [vmem:[#allocation5 + $0x80] sm:$0xff]
        %v465 = vld [vmem:[#allocation5 + $0x88] sm:$0xff]
        %v466 = vld [vmem:[#allocation5 + $0x90] sm:$0xff]
        %v467 = vld [vmem:[#allocation5 + $0x98] sm:$0xff]
        %v468 = vld [vmem:[#allocation5 + $0xa0] sm:$0xff]
        %v469 = vld [vmem:[#allocation5 + $0xa8] sm:$0xff]
        %v470 = vld [vmem:[#allocation5 + $0xb0] sm:$0xff]
        %v471 = vld [vmem:[#allocation5 + $0xb8] sm:$0xff]
        %v472 = vld [vmem:[#allocation5 + $0xc0] sm:$0xff]
        %v473 = vld [vmem:[#allocation5 + $0xc8] sm:$0xff]
        %v474 = vld [vmem:[#allocation5 + $0xd0] sm:$0xff]
        %v475 = vld [vmem:[#allocation5 + $0xd8] sm:$0xff]
        %v476 = vld [vmem:[#allocation5 + $0xe0] sm:$0xff]
        %v477 = vld [vmem:[#allocation5 + $0xe8] sm:$0xff]
        %v478 = vld [vmem:[#allocation5 + $0xf0] sm:$0xff]
        %v479 = vld [vmem:[#allocation5 + $0xf8] sm:$0xff]
        %v480 = vld [vmem:[#allocation5 + $0x100] sm:$0xff]
        %v481 = vld [vmem:[#allocation5 + $0x108] sm:$0xff]
        %v482 = vld [vmem:[#allocation5 + $0x110] sm:$0xff]
        %v483 = vld [vmem:[#allocation5 + $0x118] sm:$0xff]
        %v484 = vld [vmem:[#allocation5 + $0x120] sm:$0xff]
        %v485 = vld [vmem:[#allocation5 + $0x128] sm:$0xff]
        %v486 = vld [vmem:[#allocation5 + $0x130] sm:$0xff]
        %v487 = vld [vmem:[#allocation5 + $0x138] sm:$0xff]
        %v488 = vld [vmem:[#allocation5 + $0x140] sm:$0xff]
        %v489 = vld [vmem:[#allocation5 + $0x148] sm:$0xff]
        %v490 = vld [vmem:[#allocation5 + $0x150] sm:$0xff]
        %v491 = vld [vmem:[#allocation5 + $0x158] sm:$0xff]
        %v492 = vld [vmem:[#allocation5 + $0x160] sm:$0xff]
        %v493 = vld [vmem:[#allocation5 + $0x168] sm:$0xff]
        %v494 = vld [vmem:[#allocation5 + $0x170] sm:$0xff]
        %v495 = vld [vmem:[#allocation5 + $0x178] sm:$0xff]
        %v496 = vld [vmem:[%s4] sm:$0x3]
        %v498 = vperm.slane %v496, 0
        %v499 = vperm.slane %v496, 1
        %v504 = vrot.slane %v437, 1
        %v505 = vrot.slane %v447, 1
        %v506 = vrot.slane %v443, 1
        %v558 = vunpack.c.l.b16 %v448
        %v559 = vunpack.c.h.b16 %v448
        %v560 = vunpack.c.l.b16 %v449
        %v561 = vunpack.c.h.b16 %v449
        %v562 = vunpack.c.l.b16 %v450
        %v563 = vunpack.c.h.b16 %v450
        %v564 = vunpack.c.l.b16 %v451
        %v565 = vunpack.c.h.b16 %v451
        %v566 = vunpack.c.l.b16 %v452
        %v567 = vunpack.c.h.b16 %v452
        %v568 = vunpack.c.l.b16 %v453
        %v569 = vunpack.c.h.b16 %v453
        %v570 = vunpack.c.l.b16 %v454
        %v571 = vunpack.c.h.b16 %v454
        %v572 = vunpack.c.l.b16 %v455
        %v573 = vunpack.c.h.b16 %v455
        %v574 = vunpack.c.l.b16 %v456
        %v575 = vunpack.c.h.b16 %v456
        %v576 = vunpack.c.l.b16 %v457
        %v577 = vunpack.c.h.b16 %v457
        %v578 = vunpack.c.l.b16 %v458
        %v579 = vunpack.c.h.b16 %v458
        %v580 = vunpack.c.l.b16 %v459
        %v581 = vunpack.c.h.b16 %v459
        %v582 = vunpack.c.l.b16 %v460
        %v583 = vunpack.c.h.b16 %v460
        %v584 = vunpack.c.l.b16 %v461
        %v585 = vunpack.c.h.b16 %v461
        %v586 = vunpack.c.l.b16 %v462
        %v587 = vunpack.c.h.b16 %v462
        %v588 = vunpack.c.l.b16 %v463
        %v589 = vunpack.c.h.b16 %v463
        %v590 = vunpack.c.l.b16 %v464
        %v591 = vunpack.c.h.b16 %v464
        %v592 = vunpack.c.l.b16 %v465
        %v593 = vunpack.c.h.b16 %v465
        %v594 = vunpack.c.l.b16 %v466
        %v595 = vunpack.c.h.b16 %v466
        %v596 = vunpack.c.l.b16 %v467
        %v597 = vunpack.c.h.b16 %v467
        %v598 = vunpack.c.l.b16 %v468
        %v599 = vunpack.c.h.b16 %v468
        %v600 = vunpack.c.l.b16 %v469
        %v601 = vunpack.c.h.b16 %v469
        %v602 = vunpack.c.l.b16 %v470
        %v603 = vunpack.c.h.b16 %v470
        %v604 = vunpack.c.l.b16 %v471
        %v605 = vunpack.c.h.b16 %v471
        %v606 = vunpack.c.l.b16 %v472
        %v607 = vunpack.c.h.b16 %v472
        %v608 = vunpack.c.l.b16 %v473
        %v609 = vunpack.c.h.b16 %v473
        %v610 = vunpack.c.l.b16 %v474
        %v611 = vunpack.c.h.b16 %v474
        %v612 = vunpack.c.l.b16 %v475
        %v613 = vunpack.c.h.b16 %v475
        %v614 = vunpack.c.l.b16 %v476
        %v615 = vunpack.c.h.b16 %v476
        %v616 = vunpack.c.l.b16 %v477
        %v617 = vunpack.c.h.b16 %v477
        %v618 = vunpack.c.l.b16 %v478
        %v619 = vunpack.c.h.b16 %v478
        %v620 = vunpack.c.l.b16 %v479
        %v621 = vunpack.c.h.b16 %v479
        %v622 = vunpack.c.l.b16 %v480
        %v623 = vunpack.c.h.b16 %v480
        %v624 = vunpack.c.l.b16 %v481
        %v625 = vunpack.c.h.b16 %v481
        %v626 = vunpack.c.l.b16 %v482
        %v627 = vunpack.c.h.b16 %v482
        %v628 = vunpack.c.l.b16 %v483
        %v629 = vunpack.c.h.b16 %v483
        %v630 = vunpack.c.l.b16 %v484
        %v631 = vunpack.c.h.b16 %v484
        %v632 = vunpack.c.l.b16 %v485
        %v633 = vunpack.c.h.b16 %v485
        %v634 = vunpack.c.l.b16 %v486
        %v635 = vunpack.c.h.b16 %v486
        %v636 = vunpack.c.l.b16 %v487
        %v637 = vunpack.c.h.b16 %v487
        %v638 = vunpack.c.l.b16 %v488
        %v639 = vunpack.c.h.b16 %v488
        %v640 = vunpack.c.l.b16 %v489
        %v641 = vunpack.c.h.b16 %v489
        %v642 = vunpack.c.l.b16 %v490
        %v643 = vunpack.c.h.b16 %v490
        %v644 = vunpack.c.l.b16 %v491
        %v645 = vunpack.c.h.b16 %v491
        %v646 = vunpack.c.l.b16 %v492
        %v647 = vunpack.c.h.b16 %v492
        %v648 = vunpack.c.l.b16 %v493
        %v649 = vunpack.c.h.b16 %v493
        %v650 = vunpack.c.l.b16 %v494
        %v651 = vunpack.c.h.b16 %v494
        %v652 = vunpack.c.l.b16 %v495
        %v653 = vunpack.c.h.b16 %v495
        %v654 = vpack.c.b16 %v560, %v558
        %v655 = vpack.c.b16 %v561, %v559
        %v656 = vpack.c.b16 %v564, %v562
        %v657 = vpack.c.b16 %v565, %v563
        %v658 = vpack.c.b16 %v568, %v566
        %v659 = vpack.c.b16 %v569, %v567
        %v660 = vpack.c.b16 %v572, %v570
        %v661 = vpack.c.b16 %v573, %v571
        %v662 = vpack.c.b16 %v576, %v574
        %v663 = vpack.c.b16 %v577, %v575
        %v664 = vpack.c.b16 %v580, %v578
        %v665 = vpack.c.b16 %v581, %v579
        %v666 = vpack.c.b16 %v584, %v582
        %v667 = vpack.c.b16 %v585, %v583
        %v668 = vpack.c.b16 %v588, %v586
        %v669 = vpack.c.b16 %v589, %v587
        %v670 = vpack.c.b16 %v592, %v590
        %v671 = vpack.c.b16 %v593, %v591
        %v672 = vpack.c.b16 %v596, %v594
        %v673 = vpack.c.b16 %v597, %v595
        %v674 = vpack.c.b16 %v600, %v598
        %v675 = vpack.c.b16 %v601, %v599
        %v676 = vpack.c.b16 %v604, %v602
        %v677 = vpack.c.b16 %v605, %v603
        %v678 = vpack.c.b16 %v608, %v606
        %v679 = vpack.c.b16 %v609, %v607
        %v680 = vpack.c.b16 %v612, %v610
        %v681 = vpack.c.b16 %v613, %v611
        %v682 = vpack.c.b16 %v616, %v614
        %v683 = vpack.c.b16 %v617, %v615
        %v684 = vpack.c.b16 %v620, %v618
        %v685 = vpack.c.b16 %v621, %v619
        %v686 = vpack.c.b16 %v624, %v622
        %v687 = vpack.c.b16 %v625, %v623
        %v688 = vpack.c.b16 %v628, %v626
        %v689 = vpack.c.b16 %v629, %v627
        %v690 = vpack.c.b16 %v632, %v630
        %v691 = vpack.c.b16 %v633, %v631
        %v692 = vpack.c.b16 %v636, %v634
        %v693 = vpack.c.b16 %v637, %v635
        %v694 = vpack.c.b16 %v640, %v638
        %v695 = vpack.c.b16 %v641, %v639
        %v696 = vpack.c.b16 %v644, %v642
        %v697 = vpack.c.b16 %v645, %v643
        %v698 = vpack.c.b16 %v648, %v646
        %v699 = vpack.c.b16 %v649, %v647
        %v700 = vpack.c.b16 %v652, %v650
        %v701 = vpack.c.b16 %v653, %v651
        %750 = vmatpush.bf16.msra.mxu0 %v668
        %751 = vmatpush.bf16.msra.mxu0 %v666
        %752 = vmatpush.bf16.msra.mxu0 %v664
        %753 = vmatpush.bf16.msra.mxu0 %v662
        %754 = vmatpush.bf16.msra.mxu0 %v660
        %755 = vmatpush.bf16.msra.mxu0 %v658
        %756 = vmatpush.bf16.msra.mxu0 %v656
        %757 = vmatpush.bf16.msra.mxu0 %v654
        %758 = vmatmul.bf16.gmra.mxu0 %v504
        %v759 = vpop.f32.mrf.mxu0
        %v760 = vadd.f32 %v498, %v759
        %v761 = vpop.f32.mrf.mxu0
        %762 = vdwg.mxu0
        %763 = vmatpush.bf16.msra.mxu0 %v684
        %764 = vmatpush.bf16.msra.mxu0 %v682
        %765 = vmatpush.bf16.msra.mxu0 %v680
        %766 = vmatpush.bf16.msra.mxu0 %v678
        %767 = vmatpush.bf16.msra.mxu0 %v676
        %768 = vmatpush.bf16.msra.mxu0 %v674
        %769 = vmatpush.bf16.msra.mxu0 %v672
        %770 = vmatpush.bf16.msra.mxu0 %v670
        %771 = vmatmul.bf16.gmra.mxu0 %v505
        %v772 = vpop.f32.mrf.mxu0
        %v773 = vadd.f32 %v760, %v772
        %v774 = vpop.f32.mrf.mxu0
        %775 = vdwg.mxu0
        %776 = vmatpush.bf16.msra.mxu0 %v700
        %777 = vmatpush.bf16.msra.mxu0 %v698
        %778 = vmatpush.bf16.msra.mxu0 %v696
        %779 = vmatpush.bf16.msra.mxu0 %v694
        %780 = vmatpush.bf16.msra.mxu0 %v692
        %781 = vmatpush.bf16.msra.mxu0 %v690
        %782 = vmatpush.bf16.msra.mxu0 %v688
        %783 = vmatpush.bf16.msra.mxu0 %v686
        %784 = vmatmul.bf16.gmra.mxu0 %v506
        %v785 = vpop.f32.mrf.mxu0
        %v786 = vadd.f32 %v773, %v785
        %v787 = vpop.f32.mrf.mxu0
        %788 = vdwg.mxu0
        %789 = vmatpush.bf16.msra.mxu0 %v669
        %790 = vmatpush.bf16.msra.mxu0 %v667
        %791 = vmatpush.bf16.msra.mxu0 %v665
        %792 = vmatpush.bf16.msra.mxu0 %v663
        %793 = vmatpush.bf16.msra.mxu0 %v661
        %794 = vmatpush.bf16.msra.mxu0 %v659
        %795 = vmatpush.bf16.msra.mxu0 %v657
        %796 = vmatpush.bf16.msra.mxu0 %v655
        %797 = vmatmul.bf16.gmra.mxu0 %v504
        %v798 = vpop.f32.mrf.mxu0
        %v799 = vadd.f32 %v499, %v798
        %v800 = vpop.f32.mrf.mxu0
        %801 = vdwg.mxu0
        %802 = vmatpush.bf16.msra.mxu0 %v685
        %803 = vmatpush.bf16.msra.mxu0 %v683
        %804 = vmatpush.bf16.msra.mxu0 %v681
        %805 = vmatpush.bf16.msra.mxu0 %v679
        %806 = vmatpush.bf16.msra.mxu0 %v677
        %807 = vmatpush.bf16.msra.mxu0 %v675
        %808 = vmatpush.bf16.msra.mxu0 %v673
        %809 = vmatpush.bf16.msra.mxu0 %v671
        %810 = vmatmul.bf16.gmra.mxu0 %v505
        %v811 = vpop.f32.mrf.mxu0
        %v812 = vadd.f32 %v799, %v811
        %v813 = vpop.f32.mrf.mxu0
        %814 = vdwg.mxu0
        %815 = vmatpush.bf16.msra.mxu0 %v701
        %816 = vmatpush.bf16.msra.mxu0 %v699
        %817 = vmatpush.bf16.msra.mxu0 %v697
        %818 = vmatpush.bf16.msra.mxu0 %v695
        %819 = vmatpush.bf16.msra.mxu0 %v693
        %820 = vmatpush.bf16.msra.mxu0 %v691
        %821 = vmatpush.bf16.msra.mxu0 %v689
        %822 = vmatpush.bf16.msra.mxu0 %v687
        %823 = vmatmul.bf16.gmra.mxu0 %v506
        %v824 = vpop.f32.mrf.mxu0
        %v825 = vadd.f32 %v812, %v824
        %v826 = vpop.f32.mrf.mxu0
        %827 = vdwg.mxu0
        %v828 = vxor.u32 %v825, 2147483648
        %v829 = vmul.f32 %v828, 1.442695
        %v830 = vpow.pop %v829
        %v831 = vadd.f32 %v830, 1.0
        %v832 = vrcp.pop %v831
        %v833 = vmul.f32 %v831, %v832
        %v834 = vsub.f32 1.0, %v833
        %v835 = vmul.f32 %v832, %v834
        %v836 = vadd.f32 %v832, %v835
        %vm837 = vweird.f32 %v831
        %vm838 = vweird.f32 %v832
        %vm839 = vmor %vm837, %vm838
        %v840 = vsel %vm839, %v832, %v836
        %v841 = vand.u32 2147483647, %v831
        %vm842 = vcmp.eq.f32.partialorder %v841, 8.507059e+37
        %v843 = vand.u32 %v831, 2147483648
        %v844 = vor.u32 1.1754944e-38, %v843
        %v845 = vsel %vm842, %v844, %v840
        %v846 = vmul.f32 1.0, %v845
        %v847 = vmul.f32 %v786, %v846
        %v848 = vadd.f32 %v847, %v402
        %v849 = vmul.f32 %v848, 0.70710677
        %v850 = vpack.c.bf16 %v849, %v849
        %v851 = vrot.slane %v849, 5
        %v852 = vsel %vm407, %v851, %v849
        %v853 = vrot.slane %v852, 5
        %v854 = vsel %vm407, %v853, %v849
        %v856 = vrot.slane %v854, 7
        %v858 = vsel %vm417, %v854, %v856
        %v859 = vmul.f32 %v858, %v434
        %v860 = vpack.c.bf16 %v859, %v859
        %v861 = vsel %vm414, %v854, %v856
        %v862 = vmul.f32 %v861, %v440
        %v863 = vpack.c.bf16 %v862, %v862
        %v865 = vunpack.c.l.b16 %v850
        %v866 = vpack.c.b16 %v865, %v865
        %v867 = vrot.slane %v866, 7
        %s868 = scalar_lea.vmem [#allocation5], 384
        %v869 = vld [vmem:[%s868] sm:$0xff]
        %v870 = vld [vmem:[%s868 + $0x8] sm:$0xff]
        %v871 = vld [vmem:[%s868 + $0x10] sm:$0xff]
        %v872 = vld [vmem:[%s868 + $0x18] sm:$0xff]
        %v873 = vld [vmem:[%s868 + $0x20] sm:$0xff]
        %v874 = vld [vmem:[%s868 + $0x28] sm:$0xff]
        %v875 = vld [vmem:[%s868 + $0x30] sm:$0xff]
        %v876 = vld [vmem:[%s868 + $0x38] sm:$0xff]
        %v877 = vld [vmem:[%s868 + $0x40] sm:$0xff]
        %v878 = vld [vmem:[%s868 + $0x48] sm:$0xff]
        %v879 = vld [vmem:[%s868 + $0x50] sm:$0xff]
        %v880 = vld [vmem:[%s868 + $0x58] sm:$0xff]
        %v881 = vld [vmem:[%s868 + $0x60] sm:$0xff]
        %v882 = vld [vmem:[%s868 + $0x68] sm:$0xff]
        %v883 = vld [vmem:[%s868 + $0x70] sm:$0xff]
        %v884 = vld [vmem:[%s868 + $0x78] sm:$0xff]
        %v885 = vld [vmem:[%s868 + $0x80] sm:$0xff]
        %v886 = vld [vmem:[%s868 + $0x88] sm:$0xff]
        %v887 = vld [vmem:[%s868 + $0x90] sm:$0xff]
        %v888 = vld [vmem:[%s868 + $0x98] sm:$0xff]
        %v889 = vld [vmem:[%s868 + $0xa0] sm:$0xff]
        %v890 = vld [vmem:[%s868 + $0xa8] sm:$0xff]
        %v891 = vld [vmem:[%s868 + $0xb0] sm:$0xff]
        %v892 = vld [vmem:[%s868 + $0xb8] sm:$0xff]
        %v893 = vld [vmem:[%s868 + $0xc0] sm:$0xff]
        %v894 = vld [vmem:[%s868 + $0xc8] sm:$0xff]
        %v895 = vld [vmem:[%s868 + $0xd0] sm:$0xff]
        %v896 = vld [vmem:[%s868 + $0xd8] sm:$0xff]
        %v897 = vld [vmem:[%s868 + $0xe0] sm:$0xff]
        %v898 = vld [vmem:[%s868 + $0xe8] sm:$0xff]
        %v899 = vld [vmem:[%s868 + $0xf0] sm:$0xff]
        %v900 = vld [vmem:[%s868 + $0xf8] sm:$0xff]
        %v901 = vld [vmem:[%s868 + $0x100] sm:$0xff]
        %v902 = vld [vmem:[%s868 + $0x108] sm:$0xff]
        %v903 = vld [vmem:[%s868 + $0x110] sm:$0xff]
        %v904 = vld [vmem:[%s868 + $0x118] sm:$0xff]
        %v905 = vld [vmem:[%s868 + $0x120] sm:$0xff]
        %v906 = vld [vmem:[%s868 + $0x128] sm:$0xff]
        %v907 = vld [vmem:[%s868 + $0x130] sm:$0xff]
        %v908 = vld [vmem:[%s868 + $0x138] sm:$0xff]
        %v909 = vld [vmem:[%s868 + $0x140] sm:$0xff]
        %v910 = vld [vmem:[%s868 + $0x148] sm:$0xff]
        %v911 = vld [vmem:[%s868 + $0x150] sm:$0xff]
        %v912 = vld [vmem:[%s868 + $0x158] sm:$0xff]
        %v913 = vld [vmem:[%s868 + $0x160] sm:$0xff]
        %v914 = vld [vmem:[%s868 + $0x168] sm:$0xff]
        %v915 = vld [vmem:[%s868 + $0x170] sm:$0xff]
        %v916 = vld [vmem:[%s868 + $0x178] sm:$0xff]
        %s917 = scalar_lea.vmem %s4, 2
        %v918 = vld [vmem:[%s917] sm:$0x3]
        %v920 = vperm.slane %v918, 0
        %v921 = vperm.slane %v918, 1
        %v926 = vrot.slane %v860, 1
        %v927 = vrot.slane %v867, 1
        %v928 = vrot.slane %v863, 1
        %v980 = vunpack.c.l.b16 %v869
        %v981 = vunpack.c.h.b16 %v869
        %v982 = vunpack.c.l.b16 %v870
        %v983 = vunpack.c.h.b16 %v870
        %v984 = vunpack.c.l.b16 %v871
        %v985 = vunpack.c.h.b16 %v871
        %v986 = vunpack.c.l.b16 %v872
        %v987 = vunpack.c.h.b16 %v872
        %v988 = vunpack.c.l.b16 %v873
        %v989 = vunpack.c.h.b16 %v873
        %v990 = vunpack.c.l.b16 %v874
        %v991 = vunpack.c.h.b16 %v874
        %v992 = vunpack.c.l.b16 %v875
        %v993 = vunpack.c.h.b16 %v875
        %v994 = vunpack.c.l.b16 %v876
        %v995 = vunpack.c.h.b16 %v876
        %v996 = vunpack.c.l.b16 %v877
        %v997 = vunpack.c.h.b16 %v877
        %v998 = vunpack.c.l.b16 %v878
        %v999 = vunpack.c.h.b16 %v878
        %v1000 = vunpack.c.l.b16 %v879
        %v1001 = vunpack.c.h.b16 %v879
        %v1002 = vunpack.c.l.b16 %v880
        %v1003 = vunpack.c.h.b16 %v880
        %v1004 = vunpack.c.l.b16 %v881
        %v1005 = vunpack.c.h.b16 %v881
        %v1006 = vunpack.c.l.b16 %v882
        %v1007 = vunpack.c.h.b16 %v882
        %v1008 = vunpack.c.l.b16 %v883
        %v1009 = vunpack.c.h.b16 %v883
        %v1010 = vunpack.c.l.b16 %v884
        %v1011 = vunpack.c.h.b16 %v884
        %v1012 = vunpack.c.l.b16 %v885
        %v1013 = vunpack.c.h.b16 %v885
        %v1014 = vunpack.c.l.b16 %v886
        %v1015 = vunpack.c.h.b16 %v886
        %v1016 = vunpack.c.l.b16 %v887
        %v1017 = vunpack.c.h.b16 %v887
        %v1018 = vunpack.c.l.b16 %v888
        %v1019 = vunpack.c.h.b16 %v888
        %v1020 = vunpack.c.l.b16 %v889
        %v1021 = vunpack.c.h.b16 %v889
        %v1022 = vunpack.c.l.b16 %v890
        %v1023 = vunpack.c.h.b16 %v890
        %v1024 = vunpack.c.l.b16 %v891
        %v1025 = vunpack.c.h.b16 %v891
        %v1026 = vunpack.c.l.b16 %v892
        %v1027 = vunpack.c.h.b16 %v892
        %v1028 = vunpack.c.l.b16 %v893
        %v1029 = vunpack.c.h.b16 %v893
        %v1030 = vunpack.c.l.b16 %v894
        %v1031 = vunpack.c.h.b16 %v894
        %v1032 = vunpack.c.l.b16 %v895
        %v1033 = vunpack.c.h.b16 %v895
        %v1034 = vunpack.c.l.b16 %v896
        %v1035 = vunpack.c.h.b16 %v896
        %v1036 = vunpack.c.l.b16 %v897
        %v1037 = vunpack.c.h.b16 %v897
        %v1038 = vunpack.c.l.b16 %v898
        %v1039 = vunpack.c.h.b16 %v898
        %v1040 = vunpack.c.l.b16 %v899
        %v1041 = vunpack.c.h.b16 %v899
        %v1042 = vunpack.c.l.b16 %v900
        %v1043 = vunpack.c.h.b16 %v900
        %v1044 = vunpack.c.l.b16 %v901
        %v1045 = vunpack.c.h.b16 %v901
        %v1046 = vunpack.c.l.b16 %v902
        %v1047 = vunpack.c.h.b16 %v902
        %v1048 = vunpack.c.l.b16 %v903
        %v1049 = vunpack.c.h.b16 %v903
        %v1050 = vunpack.c.l.b16 %v904
        %v1051 = vunpack.c.h.b16 %v904
        %v1052 = vunpack.c.l.b16 %v905
        %v1053 = vunpack.c.h.b16 %v905
        %v1054 = vunpack.c.l.b16 %v906
        %v1055 = vunpack.c.h.b16 %v906
        %v1056 = vunpack.c.l.b16 %v907
        %v1057 = vunpack.c.h.b16 %v907
        %v1058 = vunpack.c.l.b16 %v908
        %v1059 = vunpack.c.h.b16 %v908
        %v1060 = vunpack.c.l.b16 %v909
        %v1061 = vunpack.c.h.b16 %v909
        %v1062 = vunpack.c.l.b16 %v910
        %v1063 = vunpack.c.h.b16 %v910
        %v1064 = vunpack.c.l.b16 %v911
        %v1065 = vunpack.c.h.b16 %v911
        %v1066 = vunpack.c.l.b16 %v912
        %v1067 = vunpack.c.h.b16 %v912
        %v1068 = vunpack.c.l.b16 %v913
        %v1069 = vunpack.c.h.b16 %v913
        %v1070 = vunpack.c.l.b16 %v914
        %v1071 = vunpack.c.h.b16 %v914
        %v1072 = vunpack.c.l.b16 %v915
        %v1073 = vunpack.c.h.b16 %v915
        %v1074 = vunpack.c.l.b16 %v916
        %v1075 = vunpack.c.h.b16 %v916
        %v1076 = vpack.c.b16 %v982, %v980
        %v1077 = vpack.c.b16 %v983, %v981
        %v1078 = vpack.c.b16 %v986, %v984
        %v1079 = vpack.c.b16 %v987, %v985
        %v1080 = vpack.c.b16 %v990, %v988
        %v1081 = vpack.c.b16 %v991, %v989
        %v1082 = vpack.c.b16 %v994, %v992
        %v1083 = vpack.c.b16 %v995, %v993
        %v1084 = vpack.c.b16 %v998, %v996
        %v1085 = vpack.c.b16 %v999, %v997
        %v1086 = vpack.c.b16 %v1002, %v1000
        %v1087 = vpack.c.b16 %v1003, %v1001
        %v1088 = vpack.c.b16 %v1006, %v1004
        %v1089 = vpack.c.b16 %v1007, %v1005
        %v1090 = vpack.c.b16 %v1010, %v1008
        %v1091 = vpack.c.b16 %v1011, %v1009
        %v1092 = vpack.c.b16 %v1014, %v1012
        %v1093 = vpack.c.b16 %v1015, %v1013
        %v1094 = vpack.c.b16 %v1018, %v1016
        %v1095 = vpack.c.b16 %v1019, %v1017
        %v1096 = vpack.c.b16 %v1022, %v1020
        %v1097 = vpack.c.b16 %v1023, %v1021
        %v1098 = vpack.c.b16 %v1026, %v1024
        %v1099 = vpack.c.b16 %v1027, %v1025
        %v1100 = vpack.c.b16 %v1030, %v1028
        %v1101 = vpack.c.b16 %v1031, %v1029
        %v1102 = vpack.c.b16 %v1034, %v1032
        %v1103 = vpack.c.b16 %v1035, %v1033
        %v1104 = vpack.c.b16 %v1038, %v1036
        %v1105 = vpack.c.b16 %v1039, %v1037
        %v1106 = vpack.c.b16 %v1042, %v1040
        %v1107 = vpack.c.b16 %v1043, %v1041
        %v1108 = vpack.c.b16 %v1046, %v1044
        %v1109 = vpack.c.b16 %v1047, %v1045
        %v1110 = vpack.c.b16 %v1050, %v1048
        %v1111 = vpack.c.b16 %v1051, %v1049
        %v1112 = vpack.c.b16 %v1054, %v1052
        %v1113 = vpack.c.b16 %v1055, %v1053
        %v1114 = vpack.c.b16 %v1058, %v1056
        %v1115 = vpack.c.b16 %v1059, %v1057
        %v1116 = vpack.c.b16 %v1062, %v1060
        %v1117 = vpack.c.b16 %v1063, %v1061
        %v1118 = vpack.c.b16 %v1066, %v1064
        %v1119 = vpack.c.b16 %v1067, %v1065
        %v1120 = vpack.c.b16 %v1070, %v1068
        %v1121 = vpack.c.b16 %v1071, %v1069
        %v1122 = vpack.c.b16 %v1074, %v1072
        %v1123 = vpack.c.b16 %v1075, %v1073
        %1172 = vmatpush.bf16.msra.mxu0 %v1090
        %1173 = vmatpush.bf16.msra.mxu0 %v1088
        %1174 = vmatpush.bf16.msra.mxu0 %v1086
        %1175 = vmatpush.bf16.msra.mxu0 %v1084
        %1176 = vmatpush.bf16.msra.mxu0 %v1082
        %1177 = vmatpush.bf16.msra.mxu0 %v1080
        %1178 = vmatpush.bf16.msra.mxu0 %v1078
        %1179 = vmatpush.bf16.msra.mxu0 %v1076
        %1180 = vmatmul.bf16.gmra.mxu0 %v926
        %v1181 = vpop.f32.mrf.mxu0
        %v1182 = vadd.f32 %v920, %v1181
        %v1183 = vpop.f32.mrf.mxu0
        %1184 = vdwg.mxu0
        %1185 = vmatpush.bf16.msra.mxu0 %v1106
        %1186 = vmatpush.bf16.msra.mxu0 %v1104
        %1187 = vmatpush.bf16.msra.mxu0 %v1102
        %1188 = vmatpush.bf16.msra.mxu0 %v1100
        %1189 = vmatpush.bf16.msra.mxu0 %v1098
        %1190 = vmatpush.bf16.msra.mxu0 %v1096
        %1191 = vmatpush.bf16.msra.mxu0 %v1094
        %1192 = vmatpush.bf16.msra.mxu0 %v1092
        %1193 = vmatmul.bf16.gmra.mxu0 %v927
        %v1194 = vpop.f32.mrf.mxu0
        %v1195 = vadd.f32 %v1182, %v1194
        %v1196 = vpop.f32.mrf.mxu0
        %1197 = vdwg.mxu0
        %1198 = vmatpush.bf16.msra.mxu0 %v1122
        %1199 = vmatpush.bf16.msra.mxu0 %v1120
        %1200 = vmatpush.bf16.msra.mxu0 %v1118
        %1201 = vmatpush.bf16.msra.mxu0 %v1116
        %1202 = vmatpush.bf16.msra.mxu0 %v1114
        %1203 = vmatpush.bf16.msra.mxu0 %v1112
        %1204 = vmatpush.bf16.msra.mxu0 %v1110
        %1205 = vmatpush.bf16.msra.mxu0 %v1108
        %1206 = vmatmul.bf16.gmra.mxu0 %v928
        %v1207 = vpop.f32.mrf.mxu0
        %v1208 = vadd.f32 %v1195, %v1207
        %v1209 = vpop.f32.mrf.mxu0
        %1210 = vdwg.mxu0
        %1211 = vmatpush.bf16.msra.mxu0 %v1091
        %1212 = vmatpush.bf16.msra.mxu0 %v1089
        %1213 = vmatpush.bf16.msra.mxu0 %v1087
        %1214 = vmatpush.bf16.msra.mxu0 %v1085
        %1215 = vmatpush.bf16.msra.mxu0 %v1083
        %1216 = vmatpush.bf16.msra.mxu0 %v1081
        %1217 = vmatpush.bf16.msra.mxu0 %v1079
        %1218 = vmatpush.bf16.msra.mxu0 %v1077
        %1219 = vmatmul.bf16.gmra.mxu0 %v926
        %v1220 = vpop.f32.mrf.mxu0
        %v1221 = vadd.f32 %v921, %v1220
        %v1222 = vpop.f32.mrf.mxu0
        %1223 = vdwg.mxu0
        %1224 = vmatpush.bf16.msra.mxu0 %v1107
        %1225 = vmatpush.bf16.msra.mxu0 %v1105
        %1226 = vmatpush.bf16.msra.mxu0 %v1103
        %1227 = vmatpush.bf16.msra.mxu0 %v1101
        %1228 = vmatpush.bf16.msra.mxu0 %v1099
        %1229 = vmatpush.bf16.msra.mxu0 %v1097
        %1230 = vmatpush.bf16.msra.mxu0 %v1095
        %1231 = vmatpush.bf16.msra.mxu0 %v1093
        %1232 = vmatmul.bf16.gmra.mxu0 %v927
        %v1233 = vpop.f32.mrf.mxu0
        %v1234 = vadd.f32 %v1221, %v1233
        %v1235 = vpop.f32.mrf.mxu0
        %1236 = vdwg.mxu0
        %1237 = vmatpush.bf16.msra.mxu0 %v1123
        %1238 = vmatpush.bf16.msra.mxu0 %v1121
        %1239 = vmatpush.bf16.msra.mxu0 %v1119
        %1240 = vmatpush.bf16.msra.mxu0 %v1117
        %1241 = vmatpush.bf16.msra.mxu0 %v1115
        %1242 = vmatpush.bf16.msra.mxu0 %v1113
        %1243 = vmatpush.bf16.msra.mxu0 %v1111
        %1244 = vmatpush.bf16.msra.mxu0 %v1109
        %1245 = vmatmul.bf16.gmra.mxu0 %v928
        %v1246 = vpop.f32.mrf.mxu0
        %v1247 = vadd.f32 %v1234, %v1246
        %v1248 = vpop.f32.mrf.mxu0
        %1249 = vdwg.mxu0
        %v1250 = vxor.u32 %v1247, 2147483648
        %v1251 = vmul.f32 %v1250, 1.442695
        %v1252 = vpow.pop %v1251
        %v1253 = vadd.f32 %v1252, 1.0
        %v1254 = vrcp.pop %v1253
        %v1255 = vmul.f32 %v1253, %v1254
        %v1256 = vsub.f32 1.0, %v1255
        %v1257 = vmul.f32 %v1254, %v1256
        %v1258 = vadd.f32 %v1254, %v1257
        %vm1259 = vweird.f32 %v1253
        %vm1260 = vweird.f32 %v1254
        %vm1261 = vmor %vm1259, %vm1260
        %v1262 = vsel %vm1261, %v1254, %v1258
        %v1263 = vand.u32 2147483647, %v1253
        %vm1264 = vcmp.eq.f32.partialorder %v1263, 8.507059e+37
        %v1265 = vand.u32 %v1253, 2147483648
        %v1266 = vor.u32 1.1754944e-38, %v1265
        %v1267 = vsel %vm1264, %v1266, %v1262
        %v1268 = vmul.f32 1.0, %v1267
        %v1269 = vmul.f32 %v1208, %v1268
        %v1270 = vadd.f32 %v1269, %v849
        %v1271 = vmul.f32 %v1270, 0.70710677
        %v1272 = vld [vmem:[#allocation7] sm:$0xff]
        %v1273 = vld [vmem:[#allocation7 + $0x8] sm:$0xff]
        %v1274 = vld [vmem:[#allocation7 + $0x10] sm:$0xff]
        %v1275 = vld [vmem:[#allocation7 + $0x18] sm:$0xff]
        %v1276 = vld [vmem:[#allocation7 + $0x20] sm:$0xff]
        %v1277 = vld [vmem:[#allocation7 + $0x28] sm:$0xff]
        %v1278 = vld [vmem:[#allocation7 + $0x30] sm:$0xff]
        %v1279 = vld [vmem:[#allocation7 + $0x38] sm:$0xff]
        %v1280 = vld [vmem:[#allocation7 + $0x40] sm:$0xff]
        %v1281 = vld [vmem:[#allocation7 + $0x48] sm:$0xff]
        %v1282 = vld [vmem:[#allocation7 + $0x50] sm:$0xff]
        %v1283 = vld [vmem:[#allocation7 + $0x58] sm:$0xff]
        %v1284 = vld [vmem:[#allocation7 + $0x60] sm:$0xff]
        %v1285 = vld [vmem:[#allocation7 + $0x68] sm:$0xff]
        %v1286 = vld [vmem:[#allocation7 + $0x70] sm:$0xff]
        %v1287 = vld [vmem:[#allocation7 + $0x78] sm:$0xff]
        %v1288 = vld [vmem:[%s6] sm:$0x1]
        %1289 = vmatpush.msra.mxu0 %v1287
        %1290 = vmatpush.msra.mxu0 %v1286
        %1291 = vmatpush.msra.mxu0 %v1285
        %1292 = vmatpush.msra.mxu0 %v1284
        %1293 = vmatpush.msra.mxu0 %v1283
        %1294 = vmatpush.msra.mxu0 %v1282
        %1295 = vmatpush.msra.mxu0 %v1281
        %1296 = vmatpush.msra.mxu0 %v1280
        %1297 = vmatpush.msra.mxu0 %v1279
        %1298 = vmatpush.msra.mxu0 %v1278
        %1299 = vmatpush.msra.mxu0 %v1277
        %1300 = vmatpush.msra.mxu0 %v1276
        %1301 = vmatpush.msra.mxu0 %v1275
        %1302 = vmatpush.msra.mxu0 %v1274
        %1303 = vmatpush.msra.mxu0 %v1273
        %1304 = vmatpush.msra.mxu0 %v1272
        %1305 = vmatmul.f32.gmra.mxu0 %v1271
        %v1306 = vpop.f32.mrf.mxu0
        %v1307 = vadd.f32 %v1288, %v1306
        %1308 = vdwg.mxu0
        %1309 = vst [vmem:[%s318] sm:$0x1] %v1307
        %s1310 = sand.u32 %s183, 1
        %s1311 = scalar_lea.sflag [#allocation4], %s1310
        %s1312 = sand.u32 %s183, 1
        %s1313 = scalar_lea.vmem [#allocation8], %s1312
        // Predicated region
        $region61: #{tpu_custom_call.1} parent=47 // pred_check
          %p1314 = pneg %p193
        $region62: #{tpu_custom_call.1} parent=47 // pred_check_branch
          %1316 = sbr.rel (%p1314) target = $region64
        $region63: #{tpu_custom_call.1} parent=47 // pred_region
          %1318 = vsyncadd %s1311, 0
          %s1319 = scalar_lea.hbm %s7, %s23
          %s1321 = sshll.u32 %s1313, 4
          %s1322 = int_to_ptr.vmem [resolvable:$true] %s1321
          %s1323 = sshll.u32 %s1319, 4
          %s1324 = int_to_ptr.hbm [resolvable:$true] %s1323
          %1326 = dma.vmem_to_hbm [thread:$0]  %s1322, 16, %s1324, %s1311
        $region64: #{tpu_custom_call.1} parent=47 // pred_fallthru
          _
      $region48: #{tpu_custom_call.1} parent=5 // pred_fallthru
        _
      %p1327 = scmp.le.s32.totalorder 2, %s18
      // Predicated region
      $region65: #{tpu_custom_call.1} parent=5 // pred_check
        %p1328 = pneg %p1327
      $region66: #{tpu_custom_call.1} parent=5 // pred_check_branch
        %1330 = sbr.rel (%p1328) target = $region68
      $region67: #{tpu_custom_call.1} parent=5 // pred_region
        %s1331 = ssub.s32 %s18, 2
        // Predicated region
        $region69: #{tpu_custom_call.1} parent=67 // pred_check
          %p1332 = pneg %p199
        $region70: #{tpu_custom_call.1} parent=67 // pred_check_branch
          %1334 = sbr.rel (%p1332) target = $region72
        $region71: #{tpu_custom_call.1} parent=67 // pred_region
          %s1335 = sand.u32 %s184, 1
          %s1336 = scalar_lea.sflag [#allocation4], %s1335
          %s1337 = sand.u32 %s184, 1
          %s1338 = scalar_lea.vmem [#allocation8], %s1337
          %1340 = dma.done %s1336, 16
        $region72: #{tpu_custom_call.1} parent=67 // pred_fallthru
          _
      $region68: #{tpu_custom_call.1} parent=5 // pred_fallthru
        _
    $region6: #{tpu_custom_call.1} parent=1 // loop_footer
      %s22 = sadd.s32 1, %s18
    $region7: #{tpu_custom_call.1} parent=1 // loop_footer_branch
      %17 = sbr.rel target = $region3
    $region8: #{tpu_custom_call.1} parent=1 // loop_exit
      _
    %1341 = vsyncpa [#allocation3], 1
    %s1342 = scalar_lea.sflag [#allocation3], 1
    %1343 = vsyncpa %s1342, 1
    %1344 = vsyncpa [#allocation6], 1
    %1345 = vsyncpa [#allocation4], 1
    %s1346 = scalar_lea.sflag [#allocation4], 1
    %1347 = vsyncpa %s1346, 1

</llo_original>
